<compile_context>
chip_gen: v7x
topology: tpu7x:2x2x1
jax: 0.10.0
libtpu: 0.0.40
codegen_flags: <defaults>
</compile_context>

<pallas_src>
import functools

import jax
import jax.numpy as jnp
from jax.experimental import pallas as pl
from jax.experimental.pallas import tpu as pltpu


# ----------------------------------------------------------------------------
# Kernel
# ----------------------------------------------------------------------------
def co_attention_kernel(s_ref, t_ref, w_ref, b_ref, out_s_ref, out_t_ref):
    W = w_ref.shape[0]
    bias = b_ref[...]            # (6, W): b1_s, b2_s, b1_t, b2_t, gamma, beta
    gamma = bias[4:5, :]
    beta = bias[5:6, :]

    def branch(x_ref, w_off, b_off, out_ref):
        x = x_ref[...]                                           # (tr, W)
        # Softmax over the singleton key axis == 1.0 exactly, so o == v:
        # q/k projections, the score and the exp are provably dead work.
        # One 2W-wide RHS [Wv | Wv@W1] -> [v | pre-ReLU hidden] in one pass.
        vh = jnp.dot(x, w_ref[:, w_off:w_off + 2 * W],
                     preferred_element_type=jnp.float32)          # (tr, 2W)
        v = vh[:, :W]
        h = jnp.maximum(vh[:, W:] + bias[b_off:b_off + 1, :], 0.0)
        y = jnp.dot(h, w_ref[:, w_off + 2 * W:w_off + 3 * W],
                    preferred_element_type=jnp.float32)
        y = y + bias[b_off + 1:b_off + 2, :] + v
        # LayerNorm(eps=1e-6) over each packed token's D lanes.  G (block-diag
        # ones/D) broadcasts the per-token mean across its lane group; the two
        # reduction matmuls take independent LHS (y, y*y) and share RHS G.
        g_mean = w_ref[:, 6 * W:]                                 # (W, W)
        mu = jnp.dot(y, g_mean, preferred_element_type=jnp.float32)
        ey2 = jnp.dot(y * y, g_mean, preferred_element_type=jnp.float32)
        var = ey2 - mu * mu
        out_ref[...] = (y - mu) * jax.lax.rsqrt(var + 1e-6) * gamma + beta

    branch(s_ref, 0, 0, out_s_ref)         # s-branch: Wv_s / FFN_s
    branch(t_ref, 3 * W, 2, out_t_ref)     # t-branch: Wv_t / FFN_t


# ----------------------------------------------------------------------------
# One-time parameter preparation (hoisted out of the per-call hot path)
# ----------------------------------------------------------------------------
def prepare_co_attention_params(params):
    D = params["wv_s"].shape[0]
    if D % 128 == 0:
        pack = 1
    elif 128 % D == 0:
        pack = 128 // D
    else:
        # TODO(synk): support dims that do not divide 128 by padding the
        # feature axis and masking the LayerNorm statistics.
        raise NotImplementedError(f"dim={D} must divide (or be a multiple of) 128")
    W = pack * D
    f32, hp = jnp.float32, jax.lax.Precision.HIGHEST
    eye = jnp.eye(pack, dtype=f32)

    def bd(w):                                  # (D, D) -> block-diagonal (W, W)
        return jnp.kron(eye, w.astype(f32))

    def rep(b):                                 # (1, D) -> (1, W)
        return jnp.tile(b.astype(f32).reshape(1, D), (1, pack))

    # Fused first-stage RHS halves: Wv and Wv@W1 (f32 HIGHEST, computed once).
    m1_s = jnp.dot(params["wv_s"].astype(f32), params["w1_s"].astype(f32), precision=hp)
    m1_t = jnp.dot(params["wv_t"].astype(f32), params["w1_t"].astype(f32), precision=hp)
    g_mean = jnp.kron(eye, jnp.full((D, D), 1.0 / D, dtype=f32))

    w_pack = jnp.concatenate(
        [bd(params["wv_s"]), bd(m1_s), bd(params["w2_s"]),
         bd(params["wv_t"]), bd(m1_t), bd(params["w2_t"]), g_mean], axis=1)
    b_pack = jnp.concatenate(
        [rep(params["b1_s"]), rep(params["b2_s"]),
         rep(params["b1_t"]), rep(params["b2_t"]),
         rep(params["ln_g"]), rep(params["ln_b"])], axis=0)
    return {"w_pack": w_pack, "b_pack": b_pack}


# ----------------------------------------------------------------------------
# Wrapper
# ----------------------------------------------------------------------------
def _round_up(x, m):
    return ((x + m - 1) // m) * m


def _cdiv(a, b):
    return -(-a // b)


def _num_tensorcores():
    """Best-effort TensorCore count; only used to decide whether the grid must
    keep >= num_cores 'parallel' steps for megacore splitting."""
    try:
        info = pltpu.get_tpu_info()
        for name in ("num_cores", "num_tensorcores", "num_tensor_cores",
                     "tensorcore_count", "core_count"):
            val = getattr(info, name, None)
            if isinstance(val, int) and val > 0:
                return val
    except Exception:
        pass
    return 1


@functools.partial(jax.jit, static_argnames=("tm",))
def co_attention_pallas(seq_s, seq_t, prepared, tm=8192):
    """tm = tokens per branch per grid step (rounded to the packing/sublane grain)."""
    B, L, D = seq_s.shape
    N = B * L
    w_pack = prepared["w_pack"]
    b_pack = prepared["b_pack"]
    W = w_pack.shape[0]
    assert w_pack.shape == (W, 7 * W) and b_pack.shape == (6, W) and W % D == 0

    P = W // D                                   # packed tokens per lane-dense row
    rows_raw = max(1, _cdiv(N, P))

    # Row tile: as large as requested (amortizes the ~0.35us/step pipeline
    # overhead), multiple of 8 sublanes, capped only so that a megacore chip
    # still gets >= 1 "parallel" step per TensorCore.
    ncores = _num_tensorcores()
    tr_req = max(8, _round_up(max(tm, P) // P, 8))
    cap = max(8, _round_up(_cdiv(rows_raw, ncores) if ncores > 1 else rows_raw, 8))
    tr = min(tr_req, cap)
    rows = _round_up(rows_raw, tr)
    grid = rows // tr
    n_tok_pad = rows * P

    def pack_tokens(x):                          # (B, L, D) -> (rows, W); free reshape
        x = x.reshape(N, D).astype(jnp.float32)
        if n_tok_pad != N:
            x = jnp.concatenate(
                [x, jnp.zeros((n_tok_pad - N, D), jnp.float32)], axis=0)
        return x.reshape(rows, W)

    xs, xt = pack_tokens(seq_s), pack_tokens(seq_t)

    tok_spec = pl.BlockSpec((tr, W), lambda i: (i, 0))
    w_spec = pl.BlockSpec((W, 7 * W), lambda i: (0, 0))     # constant block index
    b_spec = pl.BlockSpec((6, W), lambda i: (0, 0))

    grid_spec = pltpu.PrefetchScalarGridSpec(
        num_scalar_prefetch=0,
        grid=(grid,),
        in_specs=[tok_spec, tok_spec, w_spec, b_spec],
        out_specs=[tok_spec, tok_spec],
    )

    # 5 (tr,W)x(W,W)-equivalent MXU units per branch per step, 2 branches.
    cost = pl.CostEstimate(
        flops=20 * rows * W * W,
        transcendentals=2 * rows * W,
        bytes_accessed=4 * (4 * rows * W + 7 * W * W + 6 * W),
    )

    # Only raise the scoped-VMEM limit when a user-requested tile needs it.
    est_vmem = 2 * (4 * tr * W * 4) + 2 * (7 * W * W * 4) + 2 * (6 * W * 4)
    vmem_limit = est_vmem + (4 << 20) if est_vmem > (12 << 20) else None

    out_s, out_t = pl.pallas_call(
        co_attention_kernel,
        grid_spec=grid_spec,
        out_shape=(jax.ShapeDtypeStruct((rows, W), jnp.float32),
                   jax.ShapeDtypeStruct((rows, W), jnp.float32)),
        compiler_params=pltpu.CompilerParams(
            dimension_semantics=("parallel",),
            vmem_limit_bytes=vmem_limit),
        cost_estimate=cost,
    )(xs, xt, w_pack, b_pack)

    out_s = out_s.reshape(n_tok_pad, D)[:N].reshape(B, L, D)
    out_t = out_t.reshape(n_tok_pad, D)[:N].reshape(B, L, D)
    return out_s, out_t


# ----------------------------------------------------------------------------
# Pure-JAX reference (mirrors the PyTorch forward; dropout = identity)
# ----------------------------------------------------------------------------
def co_attention_ref(seq_s, seq_t, params):
    D = seq_s.shape[-1]
    s4 = seq_s[:, :, None, :]   # unsqueeze(2)
    t4 = seq_t[:, :, None, :]

    def lin(x, w):               # weights stored (in, out)
        return jnp.einsum("blkd,de->blke", x, w)

    def ln(x):
        mu = x.mean(-1, keepdims=True)
        var = ((x - mu) ** 2).mean(-1, keepdims=True)
        return (x - mu) / jnp.sqrt(var + 1e-6) * params["ln_g"][0] + params["ln_b"][0]

    def branch(xq, xkv, wq, wk, wv, w1, b1, w2, b2):
        q, k, v = lin(xq, wq), lin(xkv, wk), lin(xkv, wv)
        att = jax.nn.softmax(jnp.matmul(q / (D ** 0.5), jnp.swapaxes(k, 2, 3)), axis=-1)
        o = jnp.matmul(att, v)
        ffn = jnp.maximum(lin(o, w1) + b1[0], 0.0)
        ffn = lin(ffn, w2) + b2[0]
        return ln(ffn + o)

    att_s = branch(t4, s4, params["wq_s"], params["wk_s"], params["wv_s"],
                   params["w1_s"], params["b1_s"], params["w2_s"], params["b2_s"])
    att_t = branch(s4, t4, params["wq_t"], params["wk_t"], params["wv_t"],
                   params["w1_t"], params["b1_t"], params["w2_t"], params["b2_t"])
    return att_s[:, :, 0, :], att_t[:, :, 0, :]


def init_params(key, dim):
    names_w = ["wq_s", "wk_s", "wv_s", "wq_t", "wk_t", "wv_t",
               "w1_s", "w2_s", "w1_t", "w2_t"]
    names_b = ["b1_s", "b2_s", "b1_t", "b2_t"]
    keys = jax.random.split(key, len(names_w) + len(names_b) + 2)
    params = {}
    for i, n in enumerate(names_w):
        params[n] = 0.1 * jax.random.normal(keys[i], (dim, dim), jnp.float32)
    for j, n in enumerate(names_b):
        params[n] = 0.05 * jax.random.normal(keys[len(names_w) + j], (1, dim), jnp.float32)
    # Non-trivial LayerNorm affine so the gamma/beta path is actually exercised.
    params["ln_g"] = 1.0 + 0.1 * jax.random.normal(keys[-2], (1, dim), jnp.float32)
    params["ln_b"] = 0.05 * jax.random.normal(keys[-1], (1, dim), jnp.float32)
    return params


if __name__ == "__main__":
    B, L, D = 2, 8, 32
    key = jax.random.PRNGKey(0)
    ks, kt, kp = jax.random.split(key, 3)
    seq_s = jax.random.normal(ks, (B, L, D), jnp.float32)
    seq_t = jax.random.normal(kt, (B, L, D), jnp.float32)
    params = init_params(kp, D)

    prepared = prepare_co_attention_params(params)   # hoisted: once per weight set
    att_s, att_t = co_attention_pallas(seq_s, seq_t, prepared)
    jax.block_until_ready((att_s, att_t))

    ref_s, ref_t = co_attention_ref(seq_s, seq_t, params)
    assert jnp.allclose(att_s, ref_s, atol=1e-4, rtol=1e-4), \
        float(jnp.max(jnp.abs(att_s - ref_s)))
    assert jnp.allclose(att_t, ref_t, atol=1e-4, rtol=1e-4), \
        float(jnp.max(jnp.abs(att_t - ref_t)))

    print("KERNEL_OK")
</pallas_src>

<mosaic_0001>
module attributes {stable_mosaic.version = 11 : i64} {
  func.func @co_attention_kernel(%arg0: i32, %arg1: memref<8x128xf32, #tpu.memory_space<vmem>>, %arg2: memref<8x128xf32, #tpu.memory_space<vmem>>, %arg3: memref<128x896xf32, #tpu.memory_space<vmem>>, %arg4: memref<6x128xf32, #tpu.memory_space<vmem>>, %arg5: memref<8x128xf32, #tpu.memory_space<vmem>>, %arg6: memref<8x128xf32, #tpu.memory_space<vmem>>) attributes {dimension_semantics = [#tpu.dimension_semantics<parallel>], iteration_bounds = array<i64: 1>, scalar_prefetch = 0 : i64, scratch_operands = 0 : i64, tpu.core_type = #tpu.core_type<tc>, window_params = [{transform_indices = @transform_0, window_bounds = array<i64: 8, 128>}, {transform_indices = @transform_1, window_bounds = array<i64: 8, 128>}, {pipeline_mode = #tpu.pipeline_mode<synchronous>, transform_indices = @transform_2, window_bounds = array<i64: 128, 896>}, {pipeline_mode = #tpu.pipeline_mode<synchronous>, transform_indices = @transform_3, window_bounds = array<i64: 6, 128>}, {transform_indices = @transform_4, window_bounds = array<i64: 8, 128>}, {transform_indices = @transform_5, window_bounds = array<i64: 8, 128>}]} {
    %c0 = arith.constant 0 : index
    %c0_0 = arith.constant 0 : index
    %0 = vector.load %arg4[%c0, %c0_0] : memref<6x128xf32, #tpu.memory_space<vmem>>, vector<6x128xf32>
    %1 = vector.extract_strided_slice %0 {offsets = [4, 0], sizes = [1, 128], strides = [1, 1]} : vector<6x128xf32> to vector<1x128xf32>
    %2 = vector.extract_strided_slice %0 {offsets = [5, 0], sizes = [1, 128], strides = [1, 1]} : vector<6x128xf32> to vector<1x128xf32>
    %c0_1 = arith.constant 0 : index
    %c0_2 = arith.constant 0 : index
    %3 = vector.load %arg1[%c0_1, %c0_2] : memref<8x128xf32, #tpu.memory_space<vmem>>, vector<8x128xf32>
    %c0_3 = arith.constant 0 : index
    %c0_4 = arith.constant 0 : index
    %4 = vector.load %arg3[%c0_3, %c0_4] : memref<128x896xf32, #tpu.memory_space<vmem>>, vector<128x256xf32>
    %cst = arith.constant dense<0.000000e+00> : vector<8x256xf32>
    %5 = tpu.matmul %3, %4, %cst {dimension_numbers = #tpu.dot_dimension_numbers<[1], [0], [0], [1], [0, 0, 1, 1], [], []>} : vector<8x128xf32>, vector<128x256xf32>, vector<8x256xf32> -> vector<8x256xf32>
    %6 = vector.extract_strided_slice %5 {offsets = [0, 0], sizes = [8, 128], strides = [1, 1]} : vector<8x256xf32> to vector<8x128xf32>
    %7 = vector.extract_strided_slice %5 {offsets = [0, 128], sizes = [8, 128], strides = [1, 1]} : vector<8x256xf32> to vector<8x128xf32>
    %8 = vector.extract_strided_slice %0 {offsets = [0, 0], sizes = [1, 128], strides = [1, 1]} : vector<6x128xf32> to vector<1x128xf32>
    %9 = vector.broadcast %8 : vector<1x128xf32> to vector<8x128xf32>
    %10 = arith.addf %7, %9 : vector<8x128xf32>
    %cst_5 = arith.constant 0.000000e+00 : f32
    %11 = vector.broadcast %cst_5 : f32 to vector<8x128xf32>
    %12 = arith.maximumf %10, %11 : vector<8x128xf32>
    %c0_6 = arith.constant 0 : index
    %c256 = arith.constant 256 : index
    %13 = vector.load %arg3[%c0_6, %c256] : memref<128x896xf32, #tpu.memory_space<vmem>>, vector<128x128xf32>
    %cst_7 = arith.constant dense<0.000000e+00> : vector<8x128xf32>
    %14 = tpu.matmul %12, %13, %cst_7 {dimension_numbers = #tpu.dot_dimension_numbers<[1], [0], [0], [1], [0, 0, 1, 1], [], []>} : vector<8x128xf32>, vector<128x128xf32>, vector<8x128xf32> -> vector<8x128xf32>
    %15 = vector.extract_strided_slice %0 {offsets = [1, 0], sizes = [1, 128], strides = [1, 1]} : vector<6x128xf32> to vector<1x128xf32>
    %16 = vector.broadcast %15 : vector<1x128xf32> to vector<8x128xf32>
    %17 = arith.addf %14, %16 : vector<8x128xf32>
    %18 = arith.addf %17, %6 : vector<8x128xf32>
    %c0_8 = arith.constant 0 : index
    %c768 = arith.constant 768 : index
    %19 = vector.load %arg3[%c0_8, %c768] : memref<128x896xf32, #tpu.memory_space<vmem>>, vector<128x128xf32>
    %cst_9 = arith.constant dense<0.000000e+00> : vector<8x128xf32>
    %20 = tpu.matmul %18, %19, %cst_9 {dimension_numbers = #tpu.dot_dimension_numbers<[1], [0], [0], [1], [0, 0, 1, 1], [], []>} : vector<8x128xf32>, vector<128x128xf32>, vector<8x128xf32> -> vector<8x128xf32>
    %21 = arith.mulf %18, %18 : vector<8x128xf32>
    %cst_10 = arith.constant dense<0.000000e+00> : vector<8x128xf32>
    %22 = tpu.matmul %21, %19, %cst_10 {dimension_numbers = #tpu.dot_dimension_numbers<[1], [0], [0], [1], [0, 0, 1, 1], [], []>} : vector<8x128xf32>, vector<128x128xf32>, vector<8x128xf32> -> vector<8x128xf32>
    %23 = arith.mulf %20, %20 : vector<8x128xf32>
    %24 = arith.subf %22, %23 : vector<8x128xf32>
    %25 = arith.subf %18, %20 : vector<8x128xf32>
    %cst_11 = arith.constant 9.99999997E-7 : f32
    %26 = vector.broadcast %cst_11 : f32 to vector<8x128xf32>
    %27 = arith.addf %24, %26 : vector<8x128xf32>
    %28 = math.rsqrt %27 : vector<8x128xf32>
    %29 = arith.mulf %25, %28 : vector<8x128xf32>
    %30 = vector.broadcast %1 : vector<1x128xf32> to vector<8x128xf32>
    %31 = arith.mulf %29, %30 : vector<8x128xf32>
    %32 = vector.broadcast %2 : vector<1x128xf32> to vector<8x128xf32>
    %33 = arith.addf %31, %32 : vector<8x128xf32>
    %c0_12 = arith.constant 0 : index
    %c0_13 = arith.constant 0 : index
    %34 = vector.load %arg5[%c0_12, %c0_13] : memref<8x128xf32, #tpu.memory_space<vmem>>, vector<8x128xf32>
    tpu.vector_store %arg5[%c0_12, %c0_13], %33 {strides = array<i32>} : memref<8x128xf32, #tpu.memory_space<vmem>>, vector<8x128xf32>,
    %c0_14 = arith.constant 0 : index
    %c0_15 = arith.constant 0 : index
    %35 = vector.load %arg2[%c0_14, %c0_15] : memref<8x128xf32, #tpu.memory_space<vmem>>, vector<8x128xf32>
    %c0_16 = arith.constant 0 : index
    %c384 = arith.constant 384 : index
    %36 = vector.load %arg3[%c0_16, %c384] : memref<128x896xf32, #tpu.memory_space<vmem>>, vector<128x256xf32>
    %cst_17 = arith.constant dense<0.000000e+00> : vector<8x256xf32>
    %37 = tpu.matmul %35, %36, %cst_17 {dimension_numbers = #tpu.dot_dimension_numbers<[1], [0], [0], [1], [0, 0, 1, 1], [], []>} : vector<8x128xf32>, vector<128x256xf32>, vector<8x256xf32> -> vector<8x256xf32>
    %38 = vector.extract_strided_slice %37 {offsets = [0, 0], sizes = [8, 128], strides = [1, 1]} : vector<8x256xf32> to vector<8x128xf32>
    %39 = vector.extract_strided_slice %37 {offsets = [0, 128], sizes = [8, 128], strides = [1, 1]} : vector<8x256xf32> to vector<8x128xf32>
    %40 = vector.extract_strided_slice %0 {offsets = [2, 0], sizes = [1, 128], strides = [1, 1]} : vector<6x128xf32> to vector<1x128xf32>
    %41 = vector.broadcast %40 : vector<1x128xf32> to vector<8x128xf32>
    %42 = arith.addf %39, %41 : vector<8x128xf32>
    %cst_18 = arith.constant 0.000000e+00 : f32
    %43 = vector.broadcast %cst_18 : f32 to vector<8x128xf32>
    %44 = arith.maximumf %42, %43 : vector<8x128xf32>
    %c0_19 = arith.constant 0 : index
    %c640 = arith.constant 640 : index
    %45 = vector.load %arg3[%c0_19, %c640] : memref<128x896xf32, #tpu.memory_space<vmem>>, vector<128x128xf32>
    %cst_20 = arith.constant dense<0.000000e+00> : vector<8x128xf32>
    %46 = tpu.matmul %44, %45, %cst_20 {dimension_numbers = #tpu.dot_dimension_numbers<[1], [0], [0], [1], [0, 0, 1, 1], [], []>} : vector<8x128xf32>, vector<128x128xf32>, vector<8x128xf32> -> vector<8x128xf32>
    %47 = vector.extract_strided_slice %0 {offsets = [3, 0], sizes = [1, 128], strides = [1, 1]} : vector<6x128xf32> to vector<1x128xf32>
    %48 = vector.broadcast %47 : vector<1x128xf32> to vector<8x128xf32>
    %49 = arith.addf %46, %48 : vector<8x128xf32>
    %50 = arith.addf %49, %38 : vector<8x128xf32>
    %c0_21 = arith.constant 0 : index
    %c768_22 = arith.constant 768 : index
    %51 = vector.load %arg3[%c0_21, %c768_22] : memref<128x896xf32, #tpu.memory_space<vmem>>, vector<128x128xf32>
    %cst_23 = arith.constant dense<0.000000e+00> : vector<8x128xf32>
    %52 = tpu.matmul %50, %51, %cst_23 {dimension_numbers = #tpu.dot_dimension_numbers<[1], [0], [0], [1], [0, 0, 1, 1], [], []>} : vector<8x128xf32>, vector<128x128xf32>, vector<8x128xf32> -> vector<8x128xf32>
    %53 = arith.mulf %50, %50 : vector<8x128xf32>
    %cst_24 = arith.constant dense<0.000000e+00> : vector<8x128xf32>
    %54 = tpu.matmul %53, %51, %cst_24 {dimension_numbers = #tpu.dot_dimension_numbers<[1], [0], [0], [1], [0, 0, 1, 1], [], []>} : vector<8x128xf32>, vector<128x128xf32>, vector<8x128xf32> -> vector<8x128xf32>
    %55 = arith.mulf %52, %52 : vector<8x128xf32>
    %56 = arith.subf %54, %55 : vector<8x128xf32>
    %57 = arith.subf %50, %52 : vector<8x128xf32>
    %cst_25 = arith.constant 9.99999997E-7 : f32
    %58 = vector.broadcast %cst_25 : f32 to vector<8x128xf32>
    %59 = arith.addf %56, %58 : vector<8x128xf32>
    %60 = math.rsqrt %59 : vector<8x128xf32>
    %61 = arith.mulf %57, %60 : vector<8x128xf32>
    %62 = vector.broadcast %1 : vector<1x128xf32> to vector<8x128xf32>
    %63 = arith.mulf %61, %62 : vector<8x128xf32>
    %64 = vector.broadcast %2 : vector<1x128xf32> to vector<8x128xf32>
    %65 = arith.addf %63, %64 : vector<8x128xf32>
    %c0_26 = arith.constant 0 : index
    %c0_27 = arith.constant 0 : index
    %66 = vector.load %arg6[%c0_26, %c0_27] : memref<8x128xf32, #tpu.memory_space<vmem>>, vector<8x128xf32>
    tpu.vector_store %arg6[%c0_26, %c0_27], %65 {strides = array<i32>} : memref<8x128xf32, #tpu.memory_space<vmem>>, vector<8x128xf32>,
    return
  }
  func.func @transform_0(%arg0: i32) -> (i32, i32) {
    %c0_i32 = arith.constant 0 : i32
    %c0_i32_0 = arith.constant 0 : i32
    return %arg0, %c0_i32 : i32, i32
  }
  func.func @transform_1(%arg0: i32) -> (i32, i32) {
    %c0_i32 = arith.constant 0 : i32
    %c0_i32_0 = arith.constant 0 : i32
    return %arg0, %c0_i32 : i32, i32
  }
  func.func @transform_2(%arg0: i32) -> (i32, i32) {
    %c0_i32 = arith.constant 0 : i32
    %c0_i32_0 = arith.constant 0 : i32
    %c0_i32_1 = arith.constant 0 : i32
    return %c0_i32, %c0_i32_0 : i32, i32
  }
  func.func @transform_3(%arg0: i32) -> (i32, i32) {
    %c0_i32 = arith.constant 0 : i32
    %c0_i32_0 = arith.constant 0 : i32
    %c0_i32_1 = arith.constant 0 : i32
    return %c0_i32, %c0_i32_0 : i32, i32
  }
  func.func @transform_4(%arg0: i32) -> (i32, i32) {
    %c0_i32 = arith.constant 0 : i32
    %c0_i32_0 = arith.constant 0 : i32
    return %arg0, %c0_i32 : i32, i32
  }
  func.func @transform_5(%arg0: i32) -> (i32, i32) {
    %c0_i32 = arith.constant 0 : i32
    %c0_i32_0 = arith.constant 0 : i32
    return %arg0, %c0_i32 : i32, i32
  }
}

</mosaic_0001>

<llo_original>
// kernel: co_attention_pallas.1
$region0: #{co_attention_pallas.1}
  #allocation0 [shape = 'u32[]', space=smem, size = 0x4, offset = 0x4, fixed_abs, tag = 'smem constant byte address 0x4 - core index']
  #allocation1 [shape = 'u32[144,128]{1,0:T(1,128)}', space=vmem, size = 0x12000, scoped, tag = 'internal scratch']
  %s0 = inlined_call_operand.vmem [shape: f32[8,128], index: 0, kind: input, shape index: {}]
  %s1 = inlined_call_operand.vmem [shape: f32[8,128], index: 1, kind: input, shape index: {}]
  %s2 = inlined_call_operand.hbm [shape: f32[128,896], index: 2, kind: input, shape index: {}]
  %s3 = inlined_call_operand.vmem [shape: f32[6,128], index: 3, kind: input, shape index: {}]
  %s4 = inlined_call_operand.vmem [shape: f32[8,128], index: 4, kind: output, shape index: {0}]
  %s5 = inlined_call_operand.vmem [shape: f32[8,128], index: 5, kind: output, shape index: {1}]
  %6 = xla_tuple %s4, %s5
  %s7 = sld [smem:[#allocation0]]
  $region38: #{co_attention_pallas.1} parent=0
    _
  %s9 = ssub.s32 1, %s7
  %s10 = scalar_select 0, %s9, %s7
  $region1: #{co_attention_pallas.1} parent=0
    #allocation2 [shape = 'u8[458752]{0}', space=vmem, size = 0x70000, scoped, tag = 'input window, operand 2, single buffered']
    #allocation3 [shape = 's32[1]{0}', space=sflag, size = 0x4, scoped, tag = 'scoped memory for co_attention_pallas.1']
    %11 = vsyncpa [#allocation3], 0
    // Predicated region
    $region2: #{co_attention_pallas.1} parent=1 // pred_check
      _
    $region3: #{co_attention_pallas.1} parent=1 // pred_check_branch
      %13 = sbr.rel (0) target = $region5
    $region4: #{co_attention_pallas.1} parent=1 // pred_region
      _
    $region5: #{co_attention_pallas.1} parent=1 // pred_fallthru
      _
    // Predicated region
    $region6: #{co_attention_pallas.1} parent=1 // pred_check
      _
    $region7: #{co_attention_pallas.1} parent=1 // pred_check_branch
      %15 = sbr.rel (0) target = $region9
    $region8: #{co_attention_pallas.1} parent=1 // pred_region
      _
    $region9: #{co_attention_pallas.1} parent=1 // pred_fallthru
      _
    // Predicated region
    $region10: #{co_attention_pallas.1} parent=1 // pred_check
      _
    $region11: #{co_attention_pallas.1} parent=1 // pred_check_branch
      %17 = sbr.rel (0) target = $region13
    $region12: #{co_attention_pallas.1} parent=1 // pred_region
      %s19 = ssub.s32 14336, 14336
      %20 = vsyncadd [#allocation3], %s19
      %s21 = sshll.u32 [#allocation2], 4
      %s22 = int_to_ptr.vmem [resolvable:$true] %s21
      %27 = dma.hbm_to_vmem [thread:$0]  %s2, 14336, %s22, [#allocation3], 896, 896, 56
    $region13: #{co_attention_pallas.1} parent=1 // pred_fallthru
      _
    // Predicated region
    $region14: #{co_attention_pallas.1} parent=1 // pred_check
      _
    $region15: #{co_attention_pallas.1} parent=1 // pred_check_branch
      %29 = sbr.rel (0) target = $region17
    $region16: #{co_attention_pallas.1} parent=1 // pred_region
      _
    $region17: #{co_attention_pallas.1} parent=1 // pred_fallthru
      _
    // Predicated region
    $region18: #{co_attention_pallas.1} parent=1 // pred_check
      _
    $region19: #{co_attention_pallas.1} parent=1 // pred_check_branch
      %31 = sbr.rel (0) target = $region21
    $region20: #{co_attention_pallas.1} parent=1 // pred_region
      %32 = dma.done [#allocation3], 14336
    $region21: #{co_attention_pallas.1} parent=1 // pred_fallthru
      _
    %v33 = vld [vmem:[%s3] sm:$0x3f]
    %v34 = vld [vmem:[%s0] sm:$0xff]
    %v35 = vld [vmem:[#allocation2] sm:$0xff]
    %v36 = vld [vmem:[#allocation2 + $0x8] sm:$0xff]
    %v37 = vld [vmem:[#allocation2 + $0x38] sm:$0xff]
    %v38 = vld [vmem:[#allocation2 + $0x40] sm:$0xff]
    %v39 = vld [vmem:[#allocation2 + $0x70] sm:$0xff]
    %v40 = vld [vmem:[#allocation2 + $0x78] sm:$0xff]
    %v41 = vld [vmem:[#allocation2 + $0xa8] sm:$0xff]
    %v42 = vld [vmem:[#allocation2 + $0xb0] sm:$0xff]
    %v43 = vld [vmem:[#allocation2 + $0xe0] sm:$0xff]
    %v44 = vld [vmem:[#allocation2 + $0xe8] sm:$0xff]
    %v45 = vld [vmem:[#allocation2 + $0x118] sm:$0xff]
    %v46 = vld [vmem:[#allocation2 + $0x120] sm:$0xff]
    %v47 = vld [vmem:[#allocation2 + $0x150] sm:$0xff]
    %v48 = vld [vmem:[#allocation2 + $0x158] sm:$0xff]
    %v49 = vld [vmem:[#allocation2 + $0x188] sm:$0xff]
    %v50 = vld [vmem:[#allocation2 + $0x190] sm:$0xff]
    %v51 = vld [vmem:[#allocation2 + $0x1c0] sm:$0xff]
    %v52 = vld [vmem:[#allocation2 + $0x1c8] sm:$0xff]
    %v53 = vld [vmem:[#allocation2 + $0x1f8] sm:$0xff]
    %v54 = vld [vmem:[#allocation2 + $0x200] sm:$0xff]
    %v55 = vld [vmem:[#allocation2 + $0x230] sm:$0xff]
    %v56 = vld [vmem:[#allocation2 + $0x238] sm:$0xff]
    %v57 = vld [vmem:[#allocation2 + $0x268] sm:$0xff]
    %v58 = vld [vmem:[#allocation2 + $0x270] sm:$0xff]
    %v59 = vld [vmem:[#allocation2 + $0x2a0] sm:$0xff]
    %v60 = vld [vmem:[#allocation2 + $0x2a8] sm:$0xff]
    %v61 = vld [vmem:[#allocation2 + $0x2d8] sm:$0xff]
    %v62 = vld [vmem:[#allocation2 + $0x2e0] sm:$0xff]
    %v63 = vld [vmem:[#allocation2 + $0x310] sm:$0xff]
    %v64 = vld [vmem:[#allocation2 + $0x318] sm:$0xff]
    %v65 = vld [vmem:[#allocation2 + $0x348] sm:$0xff]
    %v66 = vld [vmem:[#allocation2 + $0x350] sm:$0xff]
    %67 = vmatprep.subr.mxu0 %v36
    %68 = vmatpush1.msra.mxu0 %v35
    %69 = vmatprep.subr.mxu0 %v38
    %70 = vmatpush1.msra.mxu0 %v37
    %71 = vmatprep.subr.mxu0 %v40
    %72 = vmatpush1.msra.mxu0 %v39
    %73 = vmatprep.subr.mxu0 %v42
    %74 = vmatpush1.msra.mxu0 %v41
    %75 = vmatprep.subr.mxu0 %v44
    %76 = vmatpush1.msra.mxu0 %v43
    %77 = vmatprep.subr.mxu0 %v46
    %78 = vmatpush1.msra.mxu0 %v45
    %79 = vmatprep.subr.mxu0 %v48
    %80 = vmatpush1.msra.mxu0 %v47
    %81 = vmatprep.subr.mxu0 %v50
    %82 = vmatpush1.msra.mxu0 %v49
    %83 = vmatprep.subr.mxu0 %v52
    %84 = vmatpush1.msra.mxu0 %v51
    %85 = vmatprep.subr.mxu0 %v54
    %86 = vmatpush1.msra.mxu0 %v53
    %87 = vmatprep.subr.mxu0 %v56
    %88 = vmatpush1.msra.mxu0 %v55
    %89 = vmatprep.subr.mxu0 %v58
    %90 = vmatpush1.msra.mxu0 %v57
    %91 = vmatprep.subr.mxu0 %v60
    %92 = vmatpush1.msra.mxu0 %v59
    %93 = vmatprep.subr.mxu0 %v62
    %94 = vmatpush1.msra.mxu0 %v61
    %95 = vmatprep.subr.mxu0 %v64
    %96 = vmatpush1.msra.mxu0 %v63
    %97 = vmatprep.subr.mxu0 %v66
    %98 = vmatpush1.msra.mxu0 %v65
    %99 = vmatprep.subr.mxu0 0.0
    %100 = vmatpush1.msra.mxu0 0.0
    %101 = vmatprep.subr.mxu0 0.0
    %102 = vmatpush1.msra.mxu0 0.0
    %103 = vmatprep.subr.mxu0 0.0
    %104 = vmatpush1.msra.mxu0 0.0
    %105 = vmatprep.subr.mxu0 0.0
    %106 = vmatpush1.msra.mxu0 0.0
    %107 = vmatprep.subr.mxu0 0.0
    %108 = vmatpush1.msra.mxu0 0.0
    %109 = vmatprep.subr.mxu0 0.0
    %110 = vmatpush1.msra.mxu0 0.0
    %111 = vmatprep.subr.mxu0 0.0
    %112 = vmatpush1.msra.mxu0 0.0
    %113 = vmatprep.subr.mxu0 0.0
    %114 = vmatpush1.msra.mxu0 0.0
    %115 = vmatprep.subr.mxu0 0.0
    %116 = vmatpush1.msra.mxu0 0.0
    %117 = vmatprep.subr.mxu0 0.0
    %118 = vmatpush1.msra.mxu0 0.0
    %119 = vmatprep.subr.mxu0 0.0
    %120 = vmatpush1.msra.mxu0 0.0
    %121 = vmatprep.subr.mxu0 0.0
    %122 = vmatpush1.msra.mxu0 0.0
    %123 = vmatprep.subr.mxu0 0.0
    %124 = vmatpush1.msra.mxu0 0.0
    %125 = vmatprep.subr.mxu0 0.0
    %126 = vmatpush1.msra.mxu0 0.0
    %127 = vmatprep.subr.mxu0 0.0
    %128 = vmatpush1.msra.mxu0 0.0
    %129 = vmatprep.subr.mxu0 0.0
    %130 = vmatpush1.msra.mxu0 0.0
    %131 = vmatprep.mubr.f32.mxu0 0.0
    %132 = vmatmul.mubr.f32.gmra.mrb[0].mxu0 %v34
    %v133 = vpop.f32.mrb[0].mxu0
    %v134 = vadd.f32 0.0, %v133
    %v135 = vpop.f32.mrb[0].mxu0
    %v136 = vadd.f32 0.0, %v135
    %137 = vdwg.mxu0
    %v138 = vlaneseq
    %v139 = vshrl.u32 %v138, 7
    %v140 = vsub.s32 0, %v139
    %v141 = vrot.slane %v33, %v140
    %v142 = vadd.f32 %v136, %v141
    %v143 = vmax.f32 %v142, 0.0
    %v144 = vld [vmem:[#allocation2 + $0x10] sm:$0xff]
    %v145 = vld [vmem:[#allocation2 + $0x48] sm:$0xff]
    %v146 = vld [vmem:[#allocation2 + $0x80] sm:$0xff]
    %v147 = vld [vmem:[#allocation2 + $0xb8] sm:$0xff]
    %v148 = vld [vmem:[#allocation2 + $0xf0] sm:$0xff]
    %v149 = vld [vmem:[#allocation2 + $0x128] sm:$0xff]
    %v150 = vld [vmem:[#allocation2 + $0x160] sm:$0xff]
    %v151 = vld [vmem:[#allocation2 + $0x198] sm:$0xff]
    %v152 = vld [vmem:[#allocation2 + $0x1d0] sm:$0xff]
    %v153 = vld [vmem:[#allocation2 + $0x208] sm:$0xff]
    %v154 = vld [vmem:[#allocation2 + $0x240] sm:$0xff]
    %v155 = vld [vmem:[#allocation2 + $0x278] sm:$0xff]
    %v156 = vld [vmem:[#allocation2 + $0x2b0] sm:$0xff]
    %v157 = vld [vmem:[#allocation2 + $0x2e8] sm:$0xff]
    %v158 = vld [vmem:[#allocation2 + $0x320] sm:$0xff]
    %v159 = vld [vmem:[#allocation2 + $0x358] sm:$0xff]
    %v160 = vlaneseq
    %v161 = vshrl.u32 %v160, 7
    %v162 = vsub.s32 1, %v161
    %v163 = vrot.slane %v33, %v162
    %164 = vmatprep.subr.mxu0 0.0
    %165 = vmatpush1.msra.mxu0 %v144
    %166 = vmatprep.subr.mxu0 0.0
    %167 = vmatpush1.msra.mxu0 %v145
    %168 = vmatprep.subr.mxu0 0.0
    %169 = vmatpush1.msra.mxu0 %v146
    %170 = vmatprep.subr.mxu0 0.0
    %171 = vmatpush1.msra.mxu0 %v147
    %172 = vmatprep.subr.mxu0 0.0
    %173 = vmatpush1.msra.mxu0 %v148
    %174 = vmatprep.subr.mxu0 0.0
    %175 = vmatpush1.msra.mxu0 %v149
    %176 = vmatprep.subr.mxu0 0.0
    %177 = vmatpush1.msra.mxu0 %v150
    %178 = vmatprep.subr.mxu0 0.0
    %179 = vmatpush1.msra.mxu0 %v151
    %180 = vmatprep.subr.mxu0 0.0
    %181 = vmatpush1.msra.mxu0 %v152
    %182 = vmatprep.subr.mxu0 0.0
    %183 = vmatpush1.msra.mxu0 %v153
    %184 = vmatprep.subr.mxu0 0.0
    %185 = vmatpush1.msra.mxu0 %v154
    %186 = vmatprep.subr.mxu0 0.0
    %187 = vmatpush1.msra.mxu0 %v155
    %188 = vmatprep.subr.mxu0 0.0
    %189 = vmatpush1.msra.mxu0 %v156
    %190 = vmatprep.subr.mxu0 0.0
    %191 = vmatpush1.msra.mxu0 %v157
    %192 = vmatprep.subr.mxu0 0.0
    %193 = vmatpush1.msra.mxu0 %v158
    %194 = vmatprep.subr.mxu0 0.0
    %195 = vmatpush1.msra.mxu0 %v159
    %196 = vmatprep.subr.mxu0 0.0
    %197 = vmatpush1.msra.mxu0 0.0
    %198 = vmatprep.subr.mxu0 0.0
    %199 = vmatpush1.msra.mxu0 0.0
    %200 = vmatprep.subr.mxu0 0.0
    %201 = vmatpush1.msra.mxu0 0.0
    %202 = vmatprep.subr.mxu0 0.0
    %203 = vmatpush1.msra.mxu0 0.0
    %204 = vmatprep.subr.mxu0 0.0
    %205 = vmatpush1.msra.mxu0 0.0
    %206 = vmatprep.subr.mxu0 0.0
    %207 = vmatpush1.msra.mxu0 0.0
    %208 = vmatprep.subr.mxu0 0.0
    %209 = vmatpush1.msra.mxu0 0.0
    %210 = vmatprep.subr.mxu0 0.0
    %211 = vmatpush1.msra.mxu0 0.0
    %212 = vmatprep.subr.mxu0 0.0
    %213 = vmatpush1.msra.mxu0 0.0
    %214 = vmatprep.subr.mxu0 0.0
    %215 = vmatpush1.msra.mxu0 0.0
    %216 = vmatprep.subr.mxu0 0.0
    %217 = vmatpush1.msra.mxu0 0.0
    %218 = vmatprep.subr.mxu0 0.0
    %219 = vmatpush1.msra.mxu0 0.0
    %220 = vmatprep.subr.mxu0 0.0
    %221 = vmatpush1.msra.mxu0 0.0
    %222 = vmatprep.subr.mxu0 0.0
    %223 = vmatpush1.msra.mxu0 0.0
    %224 = vmatprep.subr.mxu0 0.0
    %225 = vmatpush1.msra.mxu0 0.0
    %226 = vmatprep.subr.mxu0 0.0
    %227 = vmatpush1.msra.mxu0 0.0
    %228 = vmatprep.mubr.f32.mxu0 0.0
    %229 = vmatmul.mubr.f32.gmra.mrb[0].mxu0 %v143
    %v230 = vpop.f32.mrb[0].mxu0
    %v231 = vadd.f32 %v163, %v230
    %v232 = vpop.f32.mrb[0].mxu0
    %233 = vdwg.mxu0
    %v234 = vadd.f32 %v231, %v134
    %v235 = vld [vmem:[#allocation2 + $0x30] sm:$0xff]
    %v236 = vld [vmem:[#allocation2 + $0x68] sm:$0xff]
    %v237 = vld [vmem:[#allocation2 + $0xa0] sm:$0xff]
    %v238 = vld [vmem:[#allocation2 + $0xd8] sm:$0xff]
    %v239 = vld [vmem:[#allocation2 + $0x110] sm:$0xff]
    %v240 = vld [vmem:[#allocation2 + $0x148] sm:$0xff]
    %v241 = vld [vmem:[#allocation2 + $0x180] sm:$0xff]
    %v242 = vld [vmem:[#allocation2 + $0x1b8] sm:$0xff]
    %v243 = vld [vmem:[#allocation2 + $0x1f0] sm:$0xff]
    %v244 = vld [vmem:[#allocation2 + $0x228] sm:$0xff]
    %v245 = vld [vmem:[#allocation2 + $0x260] sm:$0xff]
    %v246 = vld [vmem:[#allocation2 + $0x298] sm:$0xff]
    %v247 = vld [vmem:[#allocation2 + $0x2d0] sm:$0xff]
    %v248 = vld [vmem:[#allocation2 + $0x308] sm:$0xff]
    %v249 = vld [vmem:[#allocation2 + $0x340] sm:$0xff]
    %v250 = vld [vmem:[#allocation2 + $0x378] sm:$0xff]
    %251 = vmatprep.subr.mxu0 0.0
    %252 = vmatpush1.msra.mxu0 %v235
    %253 = vmatprep.subr.mxu0 0.0
    %254 = vmatpush1.msra.mxu0 %v236
    %255 = vmatprep.subr.mxu0 0.0
    %256 = vmatpush1.msra.mxu0 %v237
    %257 = vmatprep.subr.mxu0 0.0
    %258 = vmatpush1.msra.mxu0 %v238
    %259 = vmatprep.subr.mxu0 0.0
    %260 = vmatpush1.msra.mxu0 %v239
    %261 = vmatprep.subr.mxu0 0.0
    %262 = vmatpush1.msra.mxu0 %v240
    %263 = vmatprep.subr.mxu0 0.0
    %264 = vmatpush1.msra.mxu0 %v241
    %265 = vmatprep.subr.mxu0 0.0
    %266 = vmatpush1.msra.mxu0 %v242
    %267 = vmatprep.subr.mxu0 0.0
    %268 = vmatpush1.msra.mxu0 %v243
    %269 = vmatprep.subr.mxu0 0.0
    %270 = vmatpush1.msra.mxu0 %v244
    %271 = vmatprep.subr.mxu0 0.0
    %272 = vmatpush1.msra.mxu0 %v245
    %273 = vmatprep.subr.mxu0 0.0
    %274 = vmatpush1.msra.mxu0 %v246
    %275 = vmatprep.subr.mxu0 0.0
    %276 = vmatpush1.msra.mxu0 %v247
    %277 = vmatprep.subr.mxu0 0.0
    %278 = vmatpush1.msra.mxu0 %v248
    %279 = vmatprep.subr.mxu0 0.0
    %280 = vmatpush1.msra.mxu0 %v249
    %281 = vmatprep.subr.mxu0 0.0
    %282 = vmatpush1.msra.mxu0 %v250
    %283 = vmatprep.subr.mxu0 0.0
    %284 = vmatpush1.msra.mxu0 0.0
    %285 = vmatprep.subr.mxu0 0.0
    %286 = vmatpush1.msra.mxu0 0.0
    %287 = vmatprep.subr.mxu0 0.0
    %288 = vmatpush1.msra.mxu0 0.0
    %289 = vmatprep.subr.mxu0 0.0
    %290 = vmatpush1.msra.mxu0 0.0
    %291 = vmatprep.subr.mxu0 0.0
    %292 = vmatpush1.msra.mxu0 0.0
    %293 = vmatprep.subr.mxu0 0.0
    %294 = vmatpush1.msra.mxu0 0.0
    %295 = vmatprep.subr.mxu0 0.0
    %296 = vmatpush1.msra.mxu0 0.0
    %297 = vmatprep.subr.mxu0 0.0
    %298 = vmatpush1.msra.mxu0 0.0
    %299 = vmatprep.subr.mxu0 0.0
    %300 = vmatpush1.msra.mxu0 0.0
    %301 = vmatprep.subr.mxu0 0.0
    %302 = vmatpush1.msra.mxu0 0.0
    %303 = vmatprep.subr.mxu0 0.0
    %304 = vmatpush1.msra.mxu0 0.0
    %305 = vmatprep.subr.mxu0 0.0
    %306 = vmatpush1.msra.mxu0 0.0
    %307 = vmatprep.subr.mxu0 0.0
    %308 = vmatpush1.msra.mxu0 0.0
    %309 = vmatprep.subr.mxu0 0.0
    %310 = vmatpush1.msra.mxu0 0.0
    %311 = vmatprep.subr.mxu0 0.0
    %312 = vmatpush1.msra.mxu0 0.0
    %313 = vmatprep.subr.mxu0 0.0
    %314 = vmatpush1.msra.mxu0 0.0
    %315 = vmatprep.mubr.f32.mxu0 0.0
    %316 = vmatmul.mubr.f32.gmra.mrb[0].mxu0 %v234
    %v317 = vpop.f32.mrb[0].mxu0
    %v318 = vadd.f32 0.0, %v317
    %v319 = vpop.f32.mrb[0].mxu0
    %320 = vdwg.mxu0
    %v321 = vmul.f32 %v234, %v234
    %322 = vmatprep.subr.mxu0 0.0
    %323 = vmatpush1.msra.mxu0 %v235
    %324 = vmatprep.subr.mxu0 0.0
    %325 = vmatpush1.msra.mxu0 %v236
    %326 = vmatprep.subr.mxu0 0.0
    %327 = vmatpush1.msra.mxu0 %v237
    %328 = vmatprep.subr.mxu0 0.0
    %329 = vmatpush1.msra.mxu0 %v238
    %330 = vmatprep.subr.mxu0 0.0
    %331 = vmatpush1.msra.mxu0 %v239
    %332 = vmatprep.subr.mxu0 0.0
    %333 = vmatpush1.msra.mxu0 %v240
    %334 = vmatprep.subr.mxu0 0.0
    %335 = vmatpush1.msra.mxu0 %v241
    %336 = vmatprep.subr.mxu0 0.0
    %337 = vmatpush1.msra.mxu0 %v242
    %338 = vmatprep.subr.mxu0 0.0
    %339 = vmatpush1.msra.mxu0 %v243
    %340 = vmatprep.subr.mxu0 0.0
    %341 = vmatpush1.msra.mxu0 %v244
    %342 = vmatprep.subr.mxu0 0.0
    %343 = vmatpush1.msra.mxu0 %v245
    %344 = vmatprep.subr.mxu0 0.0
    %345 = vmatpush1.msra.mxu0 %v246
    %346 = vmatprep.subr.mxu0 0.0
    %347 = vmatpush1.msra.mxu0 %v247
    %348 = vmatprep.subr.mxu0 0.0
    %349 = vmatpush1.msra.mxu0 %v248
    %350 = vmatprep.subr.mxu0 0.0
    %351 = vmatpush1.msra.mxu0 %v249
    %352 = vmatprep.subr.mxu0 0.0
    %353 = vmatpush1.msra.mxu0 %v250
    %354 = vmatprep.subr.mxu0 0.0
    %355 = vmatpush1.msra.mxu0 0.0
    %356 = vmatprep.subr.mxu0 0.0
    %357 = vmatpush1.msra.mxu0 0.0
    %358 = vmatprep.subr.mxu0 0.0
    %359 = vmatpush1.msra.mxu0 0.0
    %360 = vmatprep.subr.mxu0 0.0
    %361 = vmatpush1.msra.mxu0 0.0
    %362 = vmatprep.subr.mxu0 0.0
    %363 = vmatpush1.msra.mxu0 0.0
    %364 = vmatprep.subr.mxu0 0.0
    %365 = vmatpush1.msra.mxu0 0.0
    %366 = vmatprep.subr.mxu0 0.0
    %367 = vmatpush1.msra.mxu0 0.0
    %368 = vmatprep.subr.mxu0 0.0
    %369 = vmatpush1.msra.mxu0 0.0
    %370 = vmatprep.subr.mxu0 0.0
    %371 = vmatpush1.msra.mxu0 0.0
    %372 = vmatprep.subr.mxu0 0.0
    %373 = vmatpush1.msra.mxu0 0.0
    %374 = vmatprep.subr.mxu0 0.0
    %375 = vmatpush1.msra.mxu0 0.0
    %376 = vmatprep.subr.mxu0 0.0
    %377 = vmatpush1.msra.mxu0 0.0
    %378 = vmatprep.subr.mxu0 0.0
    %379 = vmatpush1.msra.mxu0 0.0
    %380 = vmatprep.subr.mxu0 0.0
    %381 = vmatpush1.msra.mxu0 0.0
    %382 = vmatprep.subr.mxu0 0.0
    %383 = vmatpush1.msra.mxu0 0.0
    %384 = vmatprep.subr.mxu0 0.0
    %385 = vmatpush1.msra.mxu0 0.0
    %386 = vmatprep.mubr.f32.mxu0 0.0
    %387 = vmatmul.mubr.f32.gmra.mrb[0].mxu0 %v321
    %v388 = vpop.f32.mrb[0].mxu0
    %v389 = vadd.f32 0.0, %v388
    %v390 = vpop.f32.mrb[0].mxu0
    %391 = vdwg.mxu0
    %v392 = vmul.f32 %v318, %v318
    %v393 = vsub.f32 %v389, %v392
    %v394 = vsub.f32 %v234, %v318
    %v395 = vadd.f32 %v393, 1e-06
    %v396 = vrsqrt.pop %v395
    %v397 = vmul.f32 %v394, %v396
    %v398 = vlaneseq
    %v399 = vshrl.u32 %v398, 7
    %v400 = vsub.s32 4, %v399
    %v401 = vrot.slane %v33, %v400
    %v402 = vmul.f32 %v397, %v401
    %v403 = vlaneseq
    %v404 = vshrl.u32 %v403, 7
    %v405 = vsub.s32 5, %v404
    %v406 = vrot.slane %v33, %v405
    %v407 = vadd.f32 %v402, %v406
    %408 = vst [vmem:[%s4] sm:$0xff] %v407
    %v409 = vld [vmem:[%s1] sm:$0xff]
    %v410 = vld [vmem:[#allocation2 + $0x18] sm:$0xff]
    %v411 = vld [vmem:[#allocation2 + $0x20] sm:$0xff]
    %v412 = vld [vmem:[#allocation2 + $0x50] sm:$0xff]
    %v413 = vld [vmem:[#allocation2 + $0x58] sm:$0xff]
    %v414 = vld [vmem:[#allocation2 + $0x88] sm:$0xff]
    %v415 = vld [vmem:[#allocation2 + $0x90] sm:$0xff]
    %v416 = vld [vmem:[#allocation2 + $0xc0] sm:$0xff]
    %v417 = vld [vmem:[#allocation2 + $0xc8] sm:$0xff]
    %v418 = vld [vmem:[#allocation2 + $0xf8] sm:$0xff]
    %v419 = vld [vmem:[#allocation2 + $0x100] sm:$0xff]
    %v420 = vld [vmem:[#allocation2 + $0x130] sm:$0xff]
    %v421 = vld [vmem:[#allocation2 + $0x138] sm:$0xff]
    %v422 = vld [vmem:[#allocation2 + $0x168] sm:$0xff]
    %v423 = vld [vmem:[#allocation2 + $0x170] sm:$0xff]
    %v424 = vld [vmem:[#allocation2 + $0x1a0] sm:$0xff]
    %v425 = vld [vmem:[#allocation2 + $0x1a8] sm:$0xff]
    %v426 = vld [vmem:[#allocation2 + $0x1d8] sm:$0xff]
    %v427 = vld [vmem:[#allocation2 + $0x1e0] sm:$0xff]
    %v428 = vld [vmem:[#allocation2 + $0x210] sm:$0xff]
    %v429 = vld [vmem:[#allocation2 + $0x218] sm:$0xff]
    %v430 = vld [vmem:[#allocation2 + $0x248] sm:$0xff]
    %v431 = vld [vmem:[#allocation2 + $0x250] sm:$0xff]
    %v432 = vld [vmem:[#allocation2 + $0x280] sm:$0xff]
    %v433 = vld [vmem:[#allocation2 + $0x288] sm:$0xff]
    %v434 = vld [vmem:[#allocation2 + $0x2b8] sm:$0xff]
    %v435 = vld [vmem:[#allocation2 + $0x2c0] sm:$0xff]
    %v436 = vld [vmem:[#allocation2 + $0x2f0] sm:$0xff]
    %v437 = vld [vmem:[#allocation2 + $0x2f8] sm:$0xff]
    %v438 = vld [vmem:[#allocation2 + $0x328] sm:$0xff]
    %v439 = vld [vmem:[#allocation2 + $0x330] sm:$0xff]
    %v440 = vld [vmem:[#allocation2 + $0x360] sm:$0xff]
    %v441 = vld [vmem:[#allocation2 + $0x368] sm:$0xff]
    %442 = vmatprep.subr.mxu0 %v411
    %443 = vmatpush1.msra.mxu0 %v410
    %444 = vmatprep.subr.mxu0 %v413
    %445 = vmatpush1.msra.mxu0 %v412
    %446 = vmatprep.subr.mxu0 %v415
    %447 = vmatpush1.msra.mxu0 %v414
    %448 = vmatprep.subr.mxu0 %v417
    %449 = vmatpush1.msra.mxu0 %v416
    %450 = vmatprep.subr.mxu0 %v419
    %451 = vmatpush1.msra.mxu0 %v418
    %452 = vmatprep.subr.mxu0 %v421
    %453 = vmatpush1.msra.mxu0 %v420
    %454 = vmatprep.subr.mxu0 %v423
    %455 = vmatpush1.msra.mxu0 %v422
    %456 = vmatprep.subr.mxu0 %v425
    %457 = vmatpush1.msra.mxu0 %v424
    %458 = vmatprep.subr.mxu0 %v427
    %459 = vmatpush1.msra.mxu0 %v426
    %460 = vmatprep.subr.mxu0 %v429
    %461 = vmatpush1.msra.mxu0 %v428
    %462 = vmatprep.subr.mxu0 %v431
    %463 = vmatpush1.msra.mxu0 %v430
    %464 = vmatprep.subr.mxu0 %v433
    %465 = vmatpush1.msra.mxu0 %v432
    %466 = vmatprep.subr.mxu0 %v435
    %467 = vmatpush1.msra.mxu0 %v434
    %468 = vmatprep.subr.mxu0 %v437
    %469 = vmatpush1.msra.mxu0 %v436
    %470 = vmatprep.subr.mxu0 %v439
    %471 = vmatpush1.msra.mxu0 %v438
    %472 = vmatprep.subr.mxu0 %v441
    %473 = vmatpush1.msra.mxu0 %v440
    %474 = vmatprep.subr.mxu0 0.0
    %475 = vmatpush1.msra.mxu0 0.0
    %476 = vmatprep.subr.mxu0 0.0
    %477 = vmatpush1.msra.mxu0 0.0
    %478 = vmatprep.subr.mxu0 0.0
    %479 = vmatpush1.msra.mxu0 0.0
    %480 = vmatprep.subr.mxu0 0.0
    %481 = vmatpush1.msra.mxu0 0.0
    %482 = vmatprep.subr.mxu0 0.0
    %483 = vmatpush1.msra.mxu0 0.0
    %484 = vmatprep.subr.mxu0 0.0
    %485 = vmatpush1.msra.mxu0 0.0
    %486 = vmatprep.subr.mxu0 0.0
    %487 = vmatpush1.msra.mxu0 0.0
    %488 = vmatprep.subr.mxu0 0.0
    %489 = vmatpush1.msra.mxu0 0.0
    %490 = vmatprep.subr.mxu0 0.0
    %491 = vmatpush1.msra.mxu0 0.0
    %492 = vmatprep.subr.mxu0 0.0
    %493 = vmatpush1.msra.mxu0 0.0
    %494 = vmatprep.subr.mxu0 0.0
    %495 = vmatpush1.msra.mxu0 0.0
    %496 = vmatprep.subr.mxu0 0.0
    %497 = vmatpush1.msra.mxu0 0.0
    %498 = vmatprep.subr.mxu0 0.0
    %499 = vmatpush1.msra.mxu0 0.0
    %500 = vmatprep.subr.mxu0 0.0
    %501 = vmatpush1.msra.mxu0 0.0
    %502 = vmatprep.subr.mxu0 0.0
    %503 = vmatpush1.msra.mxu0 0.0
    %504 = vmatprep.subr.mxu0 0.0
    %505 = vmatpush1.msra.mxu0 0.0
    %506 = vmatprep.mubr.f32.mxu0 0.0
    %507 = vmatmul.mubr.f32.gmra.mrb[0].mxu0 %v409
    %v508 = vpop.f32.mrb[0].mxu0
    %v509 = vadd.f32 0.0, %v508
    %v510 = vpop.f32.mrb[0].mxu0
    %v511 = vadd.f32 0.0, %v510
    %512 = vdwg.mxu0
    %v513 = vlaneseq
    %v514 = vshrl.u32 %v513, 7
    %v515 = vsub.s32 2, %v514
    %v516 = vrot.slane %v33, %v515
    %v517 = vadd.f32 %v511, %v516
    %v518 = vmax.f32 %v517, 0.0
    %v519 = vld [vmem:[#allocation2 + $0x28] sm:$0xff]
    %v520 = vld [vmem:[#allocation2 + $0x60] sm:$0xff]
    %v521 = vld [vmem:[#allocation2 + $0x98] sm:$0xff]
    %v522 = vld [vmem:[#allocation2 + $0xd0] sm:$0xff]
    %v523 = vld [vmem:[#allocation2 + $0x108] sm:$0xff]
    %v524 = vld [vmem:[#allocation2 + $0x140] sm:$0xff]
    %v525 = vld [vmem:[#allocation2 + $0x178] sm:$0xff]
    %v526 = vld [vmem:[#allocation2 + $0x1b0] sm:$0xff]
    %v527 = vld [vmem:[#allocation2 + $0x1e8] sm:$0xff]
    %v528 = vld [vmem:[#allocation2 + $0x220] sm:$0xff]
    %v529 = vld [vmem:[#allocation2 + $0x258] sm:$0xff]
    %v530 = vld [vmem:[#allocation2 + $0x290] sm:$0xff]
    %v531 = vld [vmem:[#allocation2 + $0x2c8] sm:$0xff]
    %v532 = vld [vmem:[#allocation2 + $0x300] sm:$0xff]
    %v533 = vld [vmem:[#allocation2 + $0x338] sm:$0xff]
    %v534 = vld [vmem:[#allocation2 + $0x370] sm:$0xff]
    %v535 = vlaneseq
    %v536 = vshrl.u32 %v535, 7
    %v537 = vsub.s32 3, %v536
    %v538 = vrot.slane %v33, %v537
    %539 = vmatprep.subr.mxu0 0.0
    %540 = vmatpush1.msra.mxu0 %v519
    %541 = vmatprep.subr.mxu0 0.0
    %542 = vmatpush1.msra.mxu0 %v520
    %543 = vmatprep.subr.mxu0 0.0
    %544 = vmatpush1.msra.mxu0 %v521
    %545 = vmatprep.subr.mxu0 0.0
    %546 = vmatpush1.msra.mxu0 %v522
    %547 = vmatprep.subr.mxu0 0.0
    %548 = vmatpush1.msra.mxu0 %v523
    %549 = vmatprep.subr.mxu0 0.0
    %550 = vmatpush1.msra.mxu0 %v524
    %551 = vmatprep.subr.mxu0 0.0
    %552 = vmatpush1.msra.mxu0 %v525
    %553 = vmatprep.subr.mxu0 0.0
    %554 = vmatpush1.msra.mxu0 %v526
    %555 = vmatprep.subr.mxu0 0.0
    %556 = vmatpush1.msra.mxu0 %v527
    %557 = vmatprep.subr.mxu0 0.0
    %558 = vmatpush1.msra.mxu0 %v528
    %559 = vmatprep.subr.mxu0 0.0
    %560 = vmatpush1.msra.mxu0 %v529
    %561 = vmatprep.subr.mxu0 0.0
    %562 = vmatpush1.msra.mxu0 %v530
    %563 = vmatprep.subr.mxu0 0.0
    %564 = vmatpush1.msra.mxu0 %v531
    %565 = vmatprep.subr.mxu0 0.0
    %566 = vmatpush1.msra.mxu0 %v532
    %567 = vmatprep.subr.mxu0 0.0
    %568 = vmatpush1.msra.mxu0 %v533
    %569 = vmatprep.subr.mxu0 0.0
    %570 = vmatpush1.msra.mxu0 %v534
    %571 = vmatprep.subr.mxu0 0.0
    %572 = vmatpush1.msra.mxu0 0.0
    %573 = vmatprep.subr.mxu0 0.0
    %574 = vmatpush1.msra.mxu0 0.0
    %575 = vmatprep.subr.mxu0 0.0
    %576 = vmatpush1.msra.mxu0 0.0
    %577 = vmatprep.subr.mxu0 0.0
    %578 = vmatpush1.msra.mxu0 0.0
    %579 = vmatprep.subr.mxu0 0.0
    %580 = vmatpush1.msra.mxu0 0.0
    %581 = vmatprep.subr.mxu0 0.0
    %582 = vmatpush1.msra.mxu0 0.0
    %583 = vmatprep.subr.mxu0 0.0
    %584 = vmatpush1.msra.mxu0 0.0
    %585 = vmatprep.subr.mxu0 0.0
    %586 = vmatpush1.msra.mxu0 0.0
    %587 = vmatprep.subr.mxu0 0.0
    %588 = vmatpush1.msra.mxu0 0.0
    %589 = vmatprep.subr.mxu0 0.0
    %590 = vmatpush1.msra.mxu0 0.0
    %591 = vmatprep.subr.mxu0 0.0
    %592 = vmatpush1.msra.mxu0 0.0
    %593 = vmatprep.subr.mxu0 0.0
    %594 = vmatpush1.msra.mxu0 0.0
    %595 = vmatprep.subr.mxu0 0.0
    %596 = vmatpush1.msra.mxu0 0.0
    %597 = vmatprep.subr.mxu0 0.0
    %598 = vmatpush1.msra.mxu0 0.0
    %599 = vmatprep.subr.mxu0 0.0
    %600 = vmatpush1.msra.mxu0 0.0
    %601 = vmatprep.subr.mxu0 0.0
    %602 = vmatpush1.msra.mxu0 0.0
    %603 = vmatprep.mubr.f32.mxu0 0.0
    %604 = vmatmul.mubr.f32.gmra.mrb[0].mxu0 %v518
    %v605 = vpop.f32.mrb[0].mxu0
    %v606 = vadd.f32 %v538, %v605
    %v607 = vpop.f32.mrb[0].mxu0
    %608 = vdwg.mxu0
    %v609 = vadd.f32 %v606, %v509
    %v610 = vld [vmem:[#allocation2 + $0x30] sm:$0xff]
    %v611 = vld [vmem:[#allocation2 + $0x68] sm:$0xff]
    %v612 = vld [vmem:[#allocation2 + $0xa0] sm:$0xff]
    %v613 = vld [vmem:[#allocation2 + $0xd8] sm:$0xff]
    %v614 = vld [vmem:[#allocation2 + $0x110] sm:$0xff]
    %v615 = vld [vmem:[#allocation2 + $0x148] sm:$0xff]
    %v616 = vld [vmem:[#allocation2 + $0x180] sm:$0xff]
    %v617 = vld [vmem:[#allocation2 + $0x1b8] sm:$0xff]
    %v618 = vld [vmem:[#allocation2 + $0x1f0] sm:$0xff]
    %v619 = vld [vmem:[#allocation2 + $0x228] sm:$0xff]
    %v620 = vld [vmem:[#allocation2 + $0x260] sm:$0xff]
    %v621 = vld [vmem:[#allocation2 + $0x298] sm:$0xff]
    %v622 = vld [vmem:[#allocation2 + $0x2d0] sm:$0xff]
    %v623 = vld [vmem:[#allocation2 + $0x308] sm:$0xff]
    %v624 = vld [vmem:[#allocation2 + $0x340] sm:$0xff]
    %v625 = vld [vmem:[#allocation2 + $0x378] sm:$0xff]
    %626 = vmatprep.subr.mxu0 0.0
    %627 = vmatpush1.msra.mxu0 %v610
    %628 = vmatprep.subr.mxu0 0.0
    %629 = vmatpush1.msra.mxu0 %v611
    %630 = vmatprep.subr.mxu0 0.0
    %631 = vmatpush1.msra.mxu0 %v612
    %632 = vmatprep.subr.mxu0 0.0
    %633 = vmatpush1.msra.mxu0 %v613
    %634 = vmatprep.subr.mxu0 0.0
    %635 = vmatpush1.msra.mxu0 %v614
    %636 = vmatprep.subr.mxu0 0.0
    %637 = vmatpush1.msra.mxu0 %v615
    %638 = vmatprep.subr.mxu0 0.0
    %639 = vmatpush1.msra.mxu0 %v616
    %640 = vmatprep.subr.mxu0 0.0
    %641 = vmatpush1.msra.mxu0 %v617
    %642 = vmatprep.subr.mxu0 0.0
    %643 = vmatpush1.msra.mxu0 %v618
    %644 = vmatprep.subr.mxu0 0.0
    %645 = vmatpush1.msra.mxu0 %v619
    %646 = vmatprep.subr.mxu0 0.0
    %647 = vmatpush1.msra.mxu0 %v620
    %648 = vmatprep.subr.mxu0 0.0
    %649 = vmatpush1.msra.mxu0 %v621
    %650 = vmatprep.subr.mxu0 0.0
    %651 = vmatpush1.msra.mxu0 %v622
    %652 = vmatprep.subr.mxu0 0.0
    %653 = vmatpush1.msra.mxu0 %v623
    %654 = vmatprep.subr.mxu0 0.0
    %655 = vmatpush1.msra.mxu0 %v624
    %656 = vmatprep.subr.mxu0 0.0
    %657 = vmatpush1.msra.mxu0 %v625
    %658 = vmatprep.subr.mxu0 0.0
    %659 = vmatpush1.msra.mxu0 0.0
    %660 = vmatprep.subr.mxu0 0.0
    %661 = vmatpush1.msra.mxu0 0.0
    %662 = vmatprep.subr.mxu0 0.0
    %663 = vmatpush1.msra.mxu0 0.0
    %664 = vmatprep.subr.mxu0 0.0
    %665 = vmatpush1.msra.mxu0 0.0
    %666 = vmatprep.subr.mxu0 0.0
    %667 = vmatpush1.msra.mxu0 0.0
    %668 = vmatprep.subr.mxu0 0.0
    %669 = vmatpush1.msra.mxu0 0.0
    %670 = vmatprep.subr.mxu0 0.0
    %671 = vmatpush1.msra.mxu0 0.0
    %672 = vmatprep.subr.mxu0 0.0
    %673 = vmatpush1.msra.mxu0 0.0
    %674 = vmatprep.subr.mxu0 0.0
    %675 = vmatpush1.msra.mxu0 0.0
    %676 = vmatprep.subr.mxu0 0.0
    %677 = vmatpush1.msra.mxu0 0.0
    %678 = vmatprep.subr.mxu0 0.0
    %679 = vmatpush1.msra.mxu0 0.0
    %680 = vmatprep.subr.mxu0 0.0
    %681 = vmatpush1.msra.mxu0 0.0
    %682 = vmatprep.subr.mxu0 0.0
    %683 = vmatpush1.msra.mxu0 0.0
    %684 = vmatprep.subr.mxu0 0.0
    %685 = vmatpush1.msra.mxu0 0.0
    %686 = vmatprep.subr.mxu0 0.0
    %687 = vmatpush1.msra.mxu0 0.0
    %688 = vmatprep.subr.mxu0 0.0
    %689 = vmatpush1.msra.mxu0 0.0
    %690 = vmatprep.mubr.f32.mxu0 0.0
    %691 = vmatmul.mubr.f32.gmra.mrb[0].mxu0 %v609
    %v692 = vpop.f32.mrb[0].mxu0
    %v693 = vadd.f32 0.0, %v692
    %v694 = vpop.f32.mrb[0].mxu0
    %695 = vdwg.mxu0
    %v696 = vmul.f32 %v609, %v609
    %697 = vmatprep.subr.mxu0 0.0
    %698 = vmatpush1.msra.mxu0 %v610
    %699 = vmatprep.subr.mxu0 0.0
    %700 = vmatpush1.msra.mxu0 %v611
    %701 = vmatprep.subr.mxu0 0.0
    %702 = vmatpush1.msra.mxu0 %v612
    %703 = vmatprep.subr.mxu0 0.0
    %704 = vmatpush1.msra.mxu0 %v613
    %705 = vmatprep.subr.mxu0 0.0
    %706 = vmatpush1.msra.mxu0 %v614
    %707 = vmatprep.subr.mxu0 0.0
    %708 = vmatpush1.msra.mxu0 %v615
    %709 = vmatprep.subr.mxu0 0.0
    %710 = vmatpush1.msra.mxu0 %v616
    %711 = vmatprep.subr.mxu0 0.0
    %712 = vmatpush1.msra.mxu0 %v617
    %713 = vmatprep.subr.mxu0 0.0
    %714 = vmatpush1.msra.mxu0 %v618
    %715 = vmatprep.subr.mxu0 0.0
    %716 = vmatpush1.msra.mxu0 %v619
    %717 = vmatprep.subr.mxu0 0.0
    %718 = vmatpush1.msra.mxu0 %v620
    %719 = vmatprep.subr.mxu0 0.0
    %720 = vmatpush1.msra.mxu0 %v621
    %721 = vmatprep.subr.mxu0 0.0
    %722 = vmatpush1.msra.mxu0 %v622
    %723 = vmatprep.subr.mxu0 0.0
    %724 = vmatpush1.msra.mxu0 %v623
    %725 = vmatprep.subr.mxu0 0.0
    %726 = vmatpush1.msra.mxu0 %v624
    %727 = vmatprep.subr.mxu0 0.0
    %728 = vmatpush1.msra.mxu0 %v625
    %729 = vmatprep.subr.mxu0 0.0
    %730 = vmatpush1.msra.mxu0 0.0
    %731 = vmatprep.subr.mxu0 0.0
    %732 = vmatpush1.msra.mxu0 0.0
    %733 = vmatprep.subr.mxu0 0.0
    %734 = vmatpush1.msra.mxu0 0.0
    %735 = vmatprep.subr.mxu0 0.0
    %736 = vmatpush1.msra.mxu0 0.0
    %737 = vmatprep.subr.mxu0 0.0
    %738 = vmatpush1.msra.mxu0 0.0
    %739 = vmatprep.subr.mxu0 0.0
    %740 = vmatpush1.msra.mxu0 0.0
    %741 = vmatprep.subr.mxu0 0.0
    %742 = vmatpush1.msra.mxu0 0.0
    %743 = vmatprep.subr.mxu0 0.0
    %744 = vmatpush1.msra.mxu0 0.0
    %745 = vmatprep.subr.mxu0 0.0
    %746 = vmatpush1.msra.mxu0 0.0
    %747 = vmatprep.subr.mxu0 0.0
    %748 = vmatpush1.msra.mxu0 0.0
    %749 = vmatprep.subr.mxu0 0.0
    %750 = vmatpush1.msra.mxu0 0.0
    %751 = vmatprep.subr.mxu0 0.0
    %752 = vmatpush1.msra.mxu0 0.0
    %753 = vmatprep.subr.mxu0 0.0
    %754 = vmatpush1.msra.mxu0 0.0
    %755 = vmatprep.subr.mxu0 0.0
    %756 = vmatpush1.msra.mxu0 0.0
    %757 = vmatprep.subr.mxu0 0.0
    %758 = vmatpush1.msra.mxu0 0.0
    %759 = vmatprep.subr.mxu0 0.0
    %760 = vmatpush1.msra.mxu0 0.0
    %761 = vmatprep.mubr.f32.mxu0 0.0
    %762 = vmatmul.mubr.f32.gmra.mrb[0].mxu0 %v696
    %v763 = vpop.f32.mrb[0].mxu0
    %v764 = vadd.f32 0.0, %v763
    %v765 = vpop.f32.mrb[0].mxu0
    %766 = vdwg.mxu0
    %v767 = vmul.f32 %v693, %v693
    %v768 = vsub.f32 %v764, %v767
    %v769 = vsub.f32 %v609, %v693
    %v770 = vadd.f32 %v768, 1e-06
    %v771 = vrsqrt.pop %v770
    %v772 = vmul.f32 %v769, %v771
    %v773 = vmul.f32 %v772, %v401
    %v774 = vadd.f32 %v773, %v406
    %775 = vst [vmem:[%s5] sm:$0xff] %v774
    // Predicated region
    $region22: #{co_attention_pallas.1} parent=1 // pred_check
      _
    $region23: #{co_attention_pallas.1} parent=1 // pred_check_branch
      %777 = sbr.rel (0) target = $region25
    $region24: #{co_attention_pallas.1} parent=1 // pred_region
      _
    $region25: #{co_attention_pallas.1} parent=1 // pred_fallthru
      _
    // Predicated region
    $region26: #{co_attention_pallas.1} parent=1 // pred_check
      _
    $region27: #{co_attention_pallas.1} parent=1 // pred_check_branch
      %779 = sbr.rel (0) target = $region29
    $region28: #{co_attention_pallas.1} parent=1 // pred_region
      _
    $region29: #{co_attention_pallas.1} parent=1 // pred_fallthru
      _
    // Predicated region
    $region30: #{co_attention_pallas.1} parent=1 // pred_check
      _
    $region31: #{co_attention_pallas.1} parent=1 // pred_check_branch
      %781 = sbr.rel (0) target = $region33
    $region32: #{co_attention_pallas.1} parent=1 // pred_region
      _
    $region33: #{co_attention_pallas.1} parent=1 // pred_fallthru
      _
    // Predicated region
    $region34: #{co_attention_pallas.1} parent=1 // pred_check
      _
    $region35: #{co_attention_pallas.1} parent=1 // pred_check_branch
      %783 = sbr.rel (0) target = $region37
    $region36: #{co_attention_pallas.1} parent=1 // pred_region
      _
    $region37: #{co_attention_pallas.1} parent=1 // pred_fallthru
      _
    %784 = vsyncpa [#allocation3], 1

</llo_original>
